<compile_context>
chip_gen: v6e
topology: v6e:2x2x1
jax: 0.10.0
libtpu: 0.0.40
codegen_flags: <defaults>
</compile_context>

<pallas_src>
import numpy as np

import jax
import jax.numpy as jnp
from jax import lax
from jax.experimental import pallas as pl
from jax.experimental.pallas import tpu as pltpu

SPLIT = 52  # 3dmm channel split: [:52] weight 1.0, [52:] weight 10.0


def _round_up(x, m):
    return ((x + m - 1) // m) * m


def _pick_tile(n, pad_unit, candidates, max_overhead_frac):
    """Largest tile whose zero-padding overhead is acceptable."""
    for c in candidates:
        n_pad = _round_up(n, c)
        if n_pad - n <= max(pad_unit, int(n * max_overhead_frac)):
            return c, n_pad
    c = candidates[-1]
    return c, _round_up(n, c)


# ---------------------------------------------------------------------------
# Pallas kernel: tiled weighted-distance matmul (bf16 MXU, f32 accumulation)
#   out[i, j] = np[i] + ng[j] - 2 * sum_k A[i, k] * B[j, k]
# grid = (S_pad/BS, G_pad/BG, K_pad/BK); K is the reduction ("arbitrary") axis,
# accumulated directly into the resident f32 output block; norms added as an
# epilogue on the last K step so the HBM block is written exactly once.
# ---------------------------------------------------------------------------
def _pairwise_kernel(a_ref, b_ref, np_ref, ng_ref, out_ref):
    k = pl.program_id(2)

    @pl.when(k == 0)
    def _():
        out_ref[...] = jnp.zeros_like(out_ref)

    # bf16 x bf16 -> f32; contract last dim of both operands (no host transpose).
    out_ref[...] += lax.dot_general(
        a_ref[...], b_ref[...],
        dimension_numbers=(((1,), (1,)), ((), ())),
        preferred_element_type=jnp.float32)

    @pl.when(k == pl.num_programs(2) - 1)
    def _():
        dist = np_ref[...] + ng_ref[...] - 2.0 * out_ref[...]
        # guard tiny negatives from ||p||^2 + ||g||^2 - 2 p.g cancellation
        out_ref[...] = jnp.maximum(dist, 0.0)


def _pairwise_loss_matrix(pred_e, pred_m, gt_e, gt_m, force_pallas=False):
    """Returns L_pad [>=S, >=G] (f32); valid entries are L_pad[:S, :G]."""
    S, T, E = pred_e.shape
    G = gt_e.shape[0]
    D = pred_m.shape[2]
    C = E + D
    K = T * C

    # Per-channel weights folding the per-term means and the 10x split.
    w_e = jnp.full((E,), 1.0 / (T * E), jnp.float32)
    w_m = jnp.concatenate([
        jnp.full((SPLIT,), 1.0 / (T * SPLIT), jnp.float32),
        jnp.full((D - SPLIT,), 10.0 / (T * (D - SPLIT)), jnp.float32)])
    w = jnp.tile(jnp.concatenate([w_e, w_m]), (T,))            # [K], k = t*C + c
    sqrt_w = jnp.sqrt(w)

    # Flatten (T, C) -> K; apply sqrt(w) symmetrically to both operands.
    p_w = jnp.concatenate([pred_e, pred_m], axis=-1).reshape(S, K) * sqrt_w[None, :]
    g_w = jnp.concatenate([gt_e, gt_m], axis=-1).reshape(G, K) * sqrt_w[None, :]

    # Weighted squared norms in f32 (cheap O((S+G)*K) XLA reduces).
    np_w = jnp.sum(p_w * p_w, axis=1)                          # [S]
    ng_w = jnp.sum(g_w * g_w, axis=1)                          # [G]

    # Small-problem fallback: a pallas_call here is pure launch overhead.
    if (not force_pallas) and (S * G <= 128 * 128):
        dist = np_w[:, None] + ng_w[None, :] - 2.0 * (p_w @ g_w.T)
        return jnp.maximum(dist, 0.0)

    # ---- tile / padding selection -----------------------------------------
    S_pad = _round_up(S, 16)                                   # bf16 sublane pack
    if S_pad <= 256:
        BS = S_pad
    else:
        BS, S_pad = _pick_tile(S, 128, (256, 128, 64, 32), 0.5)
    BG, G_pad = _pick_tile(G, 128, (512, 256, 128), 0.25)      # lane-dense output
    BK, K_pad = _pick_tile(K, 256, (2048, 1024, 512, 256), 0.25)

    # v7x has 2 TensorCores: keep >= 2 blocks on a parallel axis when possible.
    if (S_pad // BS) * (G_pad // BG) < 2:
        if BG > 128:
            BG //= 2
        elif BS > 16 and BS % 32 == 0:
            BS //= 2

    # Zero padding does not change the dot products.
    a = jnp.zeros((S_pad, K_pad), jnp.bfloat16).at[:S, :K].set(
        p_w.astype(jnp.bfloat16))
    b = jnp.zeros((G_pad, K_pad), jnp.bfloat16).at[:G, :K].set(
        g_w.astype(jnp.bfloat16))
    np2 = jnp.zeros((S_pad, 1), jnp.float32).at[:S, 0].set(np_w)
    ng2 = jnp.zeros((1, G_pad), jnp.float32).at[0, :G].set(ng_w)

    # Explicit VMEM budget (double-buffered inputs + resident f32 out block),
    # with headroom; capped well below v7x's 64 MiB physical VMEM.
    est = 2 * (BS * BK * 2 + BG * BK * 2 + BS * BG * 4) + 4 * (S_pad + G_pad)
    vmem_limit = int(min(48 * 2**20, max(16 * 2**20, 3 * est)))

    grid = (S_pad // BS, G_pad // BG, K_pad // BK)
    return pl.pallas_call(
        _pairwise_kernel,
        out_shape=jax.ShapeDtypeStruct((S_pad, G_pad), jnp.float32),
        grid_spec=pltpu.PrefetchScalarGridSpec(
            num_scalar_prefetch=0,
            grid=grid,
            in_specs=[
                pl.BlockSpec((BS, BK), lambda i, j, k: (i, k)),   # sqrt(w)*pred
                pl.BlockSpec((BG, BK), lambda i, j, k: (j, k)),   # sqrt(w)*gt
                pl.BlockSpec((BS, 1), lambda i, j, k: (i, 0)),    # ||p||_w^2
                pl.BlockSpec((1, BG), lambda i, j, k: (0, j)),    # ||g||_w^2
            ],
            out_specs=pl.BlockSpec((BS, BG), lambda i, j, k: (i, j)),
        ),
        compiler_params=pltpu.CompilerParams(
            dimension_semantics=("parallel", "parallel", "arbitrary"),
            vmem_limit_bytes=vmem_limit),
    )(a, b, np2, ng2)


def _validity_mask(num_appropriate, num_samples, n_rows, n_cols):
    mask = np.zeros((n_rows, n_cols), dtype=bool)
    s_off = 0
    g_off = 0
    for na, ns in zip(num_appropriate, num_samples):
        na = int(na)
        ns = int(ns)
        mask[s_off:s_off + ns, g_off:g_off + na] = True
        s_off += ns
        g_off += na
    return jnp.asarray(mask)


# ---------------------------------------------------------------------------
# VAELoss forward
# ---------------------------------------------------------------------------
def vae_loss(gt_emotion, gt_3dmm, pred_emotion, pred_3dmm,
             dist_mu, dist_scale, num_appropriate, num_samples,
             kl_p=0.0002, force_pallas=False):
    """num_appropriate / num_samples: python sequences of ints (static ragged
    structure, mirroring the host-side loop of get_compared_index)."""
    S = pred_emotion.shape[0]

    # Pairwise reconstruction-loss matrix on the MXU.
    L = _pairwise_loss_matrix(pred_emotion, pred_3dmm, gt_emotion, gt_3dmm,
                              force_pallas=force_pallas)

    # Ragged selection: static validity mask + masked row-min.
    # rec == mean_s L[s, argmin_{valid g} L[s,g]] == mean_s min_{valid g} L[s,g]
    # (identical per-row normalizers), so no second pred/gt pass and no gathers.
    # TODO(synk): ragged masked row-min and the KL mean are kept in plain XLA
    # (tiny; a standalone pallas_call here is pure launch overhead).
    mask = _validity_mask(num_appropriate, num_samples, S, L.shape[1])
    L_valid = jnp.where(mask, L[:S, :], jnp.inf)
    rec = jnp.mean(jnp.min(L_valid, axis=1))

    if dist_mu is None:
        kld = jnp.float32(0.0)
    else:
        # KL(N(mu, s) || N(0, 1)) = -log(s) + 0.5*(s^2 + mu^2 - 1);
        # per-distribution means averaged over distributions == global mean.
        kl = -jnp.log(dist_scale) + 0.5 * (dist_scale * dist_scale +
                                           dist_mu * dist_mu - 1.0)
        kld = jnp.mean(kl)

    loss = rec + kl_p * kld
    return loss, rec, kld


# ---------------------------------------------------------------------------
# Pure-JAX f32 reference mirroring the PyTorch code exactly
# (direct (p-g)^2 form, argmin -> gather -> three global MSEs).
# ---------------------------------------------------------------------------
def _reference_loss(gt_e, gt_m, pred_e, pred_m, dist_mu, dist_scale,
                    num_appropriate, num_samples, kl_p):
    S = pred_e.shape[0]
    G = gt_e.shape[0]
    de = pred_e[:, None] - gt_e[None]                  # [S, G, T, E]
    dm = pred_m[:, None] - gt_m[None]                  # [S, G, T, D]
    L = (jnp.mean(de ** 2, axis=(2, 3))
         + jnp.mean(dm[..., :SPLIT] ** 2, axis=(2, 3))
         + 10.0 * jnp.mean(dm[..., SPLIT:] ** 2, axis=(2, 3)))
    mask = _validity_mask(num_appropriate, num_samples, S, G)
    idx = jnp.argmin(jnp.where(mask, L, jnp.inf), axis=1)
    ge_sel = gt_e[idx]
    gm_sel = gt_m[idx]
    rec = (jnp.mean((pred_e - ge_sel) ** 2)
           + jnp.mean((pred_m[..., :SPLIT] - gm_sel[..., :SPLIT]) ** 2)
           + 10.0 * jnp.mean((pred_m[..., SPLIT:] - gm_sel[..., SPLIT:]) ** 2))
    kl = -jnp.log(dist_scale) + 0.5 * (dist_scale * dist_scale +
                                       dist_mu * dist_mu - 1.0)
    kld = jnp.mean(kl)
    return rec + kl_p * kld, rec, kld


if __name__ == "__main__":
    key = jax.random.PRNGKey(0)
    # Small-but-representative ragged batch (4 batch elements).
    num_appropriate = [40, 36, 44, 40]   # GT candidates per batch element -> G=160
    num_samples = [32, 32, 32, 32]       # predicted samples per element   -> S=128
    G = sum(num_appropriate)
    S = sum(num_samples)
    T, E, D = 16, 25, 58                 # seq len, emotion dim, 3dmm dim (52 + 6)
    Nd, Ldim = 3, 32                     # number of Normal distributions, latent dim

    k = jax.random.split(key, 6)
    gt_emotion   = jax.random.normal(k[0], (G, T, E), jnp.float32)
    gt_3dmm      = jax.random.normal(k[1], (G, T, D), jnp.float32)
    pred_emotion = jax.random.normal(k[2], (S, T, E), jnp.float32)
    pred_3dmm    = jax.random.normal(k[3], (S, T, D), jnp.float32)
    dist_mu      = jax.random.normal(k[4], (Nd, S, Ldim), jnp.float32)
    dist_scale   = jax.nn.softplus(
        jax.random.normal(k[5], (Nd, S, Ldim), jnp.float32)) + 1e-3

    loss, rec, kld = vae_loss(gt_emotion, gt_3dmm, pred_emotion, pred_3dmm,
                              dist_mu, dist_scale, num_appropriate, num_samples,
                              kl_p=0.0002, force_pallas=True)
    jax.block_until_ready((loss, rec, kld))

    # Validate the bf16 reformulated kernel against the f32 direct-form reference.
    loss_r, rec_r, kld_r = _reference_loss(gt_emotion, gt_3dmm, pred_emotion,
                                           pred_3dmm, dist_mu, dist_scale,
                                           num_appropriate, num_samples, 0.0002)
    jax.block_until_ready((loss_r, rec_r, kld_r))
    np.testing.assert_allclose(float(rec), float(rec_r), rtol=2e-2, atol=2e-2)
    np.testing.assert_allclose(float(kld), float(kld_r), rtol=2e-2, atol=2e-2)
    np.testing.assert_allclose(float(loss), float(loss_r), rtol=2e-2, atol=2e-2)

    print("KERNEL_OK")
</pallas_src>

<mosaic_0001>
module attributes {stable_mosaic.version = 11 : i64} {
  func.func @_pairwise_kernel(%arg0: i32, %arg1: i32, %arg2: i32, %arg3: memref<128x512xbf16, #tpu.memory_space<vmem>>, %arg4: memref<128x512xbf16, #tpu.memory_space<vmem>>, %arg5: memref<128x1xf32, #tpu.memory_space<vmem>>, %arg6: memref<1x128xf32, #tpu.memory_space<vmem>>, %arg7: memref<128x128xf32, #tpu.memory_space<vmem>>) attributes {dimension_semantics = [#tpu.dimension_semantics<parallel>, #tpu.dimension_semantics<parallel>, #tpu.dimension_semantics<arbitrary>], iteration_bounds = array<i64: 1, 2, 3>, scalar_prefetch = 0 : i64, scratch_operands = 0 : i64, tpu.core_type = #tpu.core_type<tc>, window_params = [{transform_indices = @transform_0, window_bounds = array<i64: 128, 512>}, {transform_indices = @transform_1, window_bounds = array<i64: 128, 512>}, {transform_indices = @transform_2, window_bounds = array<i64: 128, 1>}, {transform_indices = @transform_3, window_bounds = array<i64: 1, 128>}, {transform_indices = @transform_4, window_bounds = array<i64: 128, 128>}]} {
    %c0_i32 = arith.constant 0 : i32
    %0 = arith.cmpi eq, %arg2, %c0_i32 : i32
    %1 = arith.extui %0 : i1 to i32
    %c0_i32_0 = arith.constant 0 : i32
    %2 = arith.cmpi ne, %1, %c0_i32_0 : i32
    scf.if %2 {
      %cst_9 = arith.constant 0.000000e+00 : f32
      %12 = vector.broadcast %cst_9 : f32 to vector<128x128xf32>
      %c0_10 = arith.constant 0 : index
      %c0_11 = arith.constant 0 : index
      %13 = vector.load %arg7[%c0_10, %c0_11] : memref<128x128xf32, #tpu.memory_space<vmem>>, vector<128x128xf32>
      tpu.vector_store %arg7[%c0_10, %c0_11], %12 {strides = array<i32>} : memref<128x128xf32, #tpu.memory_space<vmem>>, vector<128x128xf32>,
    } else {
    }
    %c0 = arith.constant 0 : index
    %c0_1 = arith.constant 0 : index
    %3 = vector.load %arg7[%c0, %c0_1] : memref<128x128xf32, #tpu.memory_space<vmem>>, vector<128x128xf32>
    %c0_2 = arith.constant 0 : index
    %c0_3 = arith.constant 0 : index
    %4 = vector.load %arg3[%c0_2, %c0_3] : memref<128x512xbf16, #tpu.memory_space<vmem>>, vector<128x512xbf16>
    %c0_4 = arith.constant 0 : index
    %c0_5 = arith.constant 0 : index
    %5 = vector.load %arg4[%c0_4, %c0_5] : memref<128x512xbf16, #tpu.memory_space<vmem>>, vector<128x512xbf16>
    %cst = arith.constant dense<0.000000e+00> : vector<128x128xf32>
    %6 = tpu.matmul %4, %5, %cst {dimension_numbers = #tpu.dot_dimension_numbers<[1], [1], [0], [0], [0, 0, 1, 0], [], []>} : vector<128x512xbf16>, vector<128x512xbf16>, vector<128x128xf32> -> vector<128x128xf32>
    %7 = arith.addf %3, %6 : vector<128x128xf32>
    %c0_6 = arith.constant 0 : index
    %c0_7 = arith.constant 0 : index
    %8 = vector.load %arg7[%c0_6, %c0_7] : memref<128x128xf32, #tpu.memory_space<vmem>>, vector<128x128xf32>
    tpu.vector_store %arg7[%c0_6, %c0_7], %7 {strides = array<i32>} : memref<128x128xf32, #tpu.memory_space<vmem>>, vector<128x128xf32>,
    %c2_i32 = arith.constant 2 : i32
    %9 = arith.cmpi eq, %arg2, %c2_i32 : i32
    %10 = arith.extui %9 : i1 to i32
    %c0_i32_8 = arith.constant 0 : i32
    %11 = arith.cmpi ne, %10, %c0_i32_8 : i32
    scf.if %11 {
      %c0_9 = arith.constant 0 : index
      %c0_10 = arith.constant 0 : index
      %12 = vector.load %arg5[%c0_9, %c0_10] : memref<128x1xf32, #tpu.memory_space<vmem>>, vector<128x1xf32>
      %c0_11 = arith.constant 0 : index
      %c0_12 = arith.constant 0 : index
      %13 = vector.load %arg6[%c0_11, %c0_12] : memref<1x128xf32, #tpu.memory_space<vmem>>, vector<1x128xf32>
      %14 = vector.broadcast %12 : vector<128x1xf32> to vector<128x128xf32>
      %15 = vector.broadcast %13 : vector<1x128xf32> to vector<128x128xf32>
      %16 = arith.addf %14, %15 : vector<128x128xf32>
      %c0_13 = arith.constant 0 : index
      %c0_14 = arith.constant 0 : index
      %17 = vector.load %arg7[%c0_13, %c0_14] : memref<128x128xf32, #tpu.memory_space<vmem>>, vector<128x128xf32>
      %cst_15 = arith.constant 2.000000e+00 : f32
      %18 = vector.broadcast %cst_15 : f32 to vector<128x128xf32>
      %19 = arith.mulf %18, %17 : vector<128x128xf32>
      %20 = arith.subf %16, %19 : vector<128x128xf32>
      %cst_16 = arith.constant 0.000000e+00 : f32
      %21 = vector.broadcast %cst_16 : f32 to vector<128x128xf32>
      %22 = arith.maximumf %20, %21 : vector<128x128xf32>
      %c0_17 = arith.constant 0 : index
      %c0_18 = arith.constant 0 : index
      %23 = vector.load %arg7[%c0_17, %c0_18] : memref<128x128xf32, #tpu.memory_space<vmem>>, vector<128x128xf32>
      tpu.vector_store %arg7[%c0_17, %c0_18], %22 {strides = array<i32>} : memref<128x128xf32, #tpu.memory_space<vmem>>, vector<128x128xf32>,
    } else {
    }
    return
  }
  func.func @transform_0(%arg0: i32, %arg1: i32, %arg2: i32) -> (i32, i32) {
    %c0_i32 = arith.constant 0 : i32
    return %arg0, %arg2 : i32, i32
  }
  func.func @transform_1(%arg0: i32, %arg1: i32, %arg2: i32) -> (i32, i32) {
    %c0_i32 = arith.constant 0 : i32
    return %arg1, %arg2 : i32, i32
  }
  func.func @transform_2(%arg0: i32, %arg1: i32, %arg2: i32) -> (i32, i32) {
    %c0_i32 = arith.constant 0 : i32
    %c0_i32_0 = arith.constant 0 : i32
    return %arg0, %c0_i32 : i32, i32
  }
  func.func @transform_3(%arg0: i32, %arg1: i32, %arg2: i32) -> (i32, i32) {
    %c0_i32 = arith.constant 0 : i32
    %c0_i32_0 = arith.constant 0 : i32
    return %c0_i32, %arg1 : i32, i32
  }
  func.func @transform_4(%arg0: i32, %arg1: i32, %arg2: i32) -> (i32, i32) {
    %c0_i32 = arith.constant 0 : i32
    return %arg0, %arg1 : i32, i32
  }
}

</mosaic_0001>

<llo_original>
// kernel: tpu_custom_call.1
$region0: #{tpu_custom_call.1}
  #allocation0 [shape = 'u32[]', space=smem, size = 0x4, offset = 0x4, fixed_abs, tag = 'smem constant byte address 0x4 - core index']
  #allocation1 [shape = 'u32[144,128]{1,0:T(1,128)}', space=vmem, size = 0x12000, scoped, tag = 'internal scratch']
  %s0 = inlined_call_operand.hbm [shape: bf16[128,1536], index: 0, kind: input, shape index: {}]
  %s1 = inlined_call_operand.hbm [shape: bf16[256,1536], index: 1, kind: input, shape index: {}]
  %s2 = inlined_call_operand.vmem [shape: f32[128,1], index: 2, kind: input, shape index: {}]
  %s3 = inlined_call_operand.vmem [shape: f32[1,256], index: 3, kind: input, shape index: {}]
  %s4 = inlined_call_operand.hbm [shape: f32[128,256], index: 4, kind: output, shape index: {}]
  %s5 = sld [smem:[#allocation0]]
  $region65: #{tpu_custom_call.1} parent=0
    _
  %s7 = ssub.s32 1, %s5
  %s8 = scalar_select 0, %s7, %s5
  $region1: #{tpu_custom_call.1} parent=0
    #allocation2 [shape = 'u8[262144]{0}', space=vmem, size = 0x40000, scoped, tag = 'input window, operand 0']
    #allocation3 [shape = 's32[2]{0}', space=sflag, size = 0x8, scoped, tag = 'scoped memory for tpu_custom_call.1']
    #allocation4 [shape = 's32[2]{0}', space=sflag, size = 0x8, scoped, tag = 'scoped memory for tpu_custom_call.1']
    #allocation5 [shape = 'u8[262144]{0}', space=vmem, size = 0x40000, scoped, tag = 'input window, operand 1']
    #allocation6 [shape = 's32[2]{0}', space=sflag, size = 0x8, scoped, tag = 'scoped memory for tpu_custom_call.1']
    #allocation7 [shape = 'u8[131072]{0}', space=vmem, size = 0x20000, scoped, tag = 'output window, operand 0']
    %9 = vsyncpa [#allocation3], 0
    %s10 = scalar_lea.sflag [#allocation3], 1
    %11 = vsyncpa %s10, 0
    %12 = vsyncpa [#allocation6], 0
    %s13 = scalar_lea.sflag [#allocation6], 1
    %14 = vsyncpa %s13, 0
    %15 = vsyncpa [#allocation4], 0
    %s16 = scalar_lea.sflag [#allocation4], 1
    %17 = vsyncpa %s16, 0
    loop: start=0, step=1, limit=8
    $region2: #{tpu_custom_call.1} parent=1 // loop_pre_header
      _
    $region3: #{tpu_custom_call.1} parent=1 // loop_header
      %s19 = sphi 0, %s23
      %p20 = scmp.ge.s32.totalorder %s19, 8
      %s26 = sphi 0, %s45
      %s27 = sphi 0, %s41
      %s28 = sphi 0, %s37
      %s29 = sphi 0, %s26
      %s30 = sphi 0, %s27
      %s31 = sphi 0, %s28
      %s32 = sphi 0, %s29
      %s33 = sphi 0, %s30
      %s34 = sphi 0, %s31
      %s50 = sphi 0, %s52
      %s53 = sphi 0, %s50
      %s54 = sphi 0, %s53
      %s70 = sphi 0, %s54
      %s78 = sphi 0, %s80
      %s81 = sphi 0, %s78
      %s82 = sphi 0, %s81
      %s98 = sphi 0, %s82
      %s104 = sphi 0, %s106
      %s107 = sphi 0, %s104
      %s108 = sphi 0, %s107
      %s124 = sphi 0, %s108
      %s130 = sphi 0, %s132
      %s133 = sphi 0, %s130
      %s134 = sphi 0, %s133
      %s150 = sphi 0, %s134
      %s158 = sphi 0, %s160
      %s161 = sphi 0, %s158
      %s162 = sphi 0, %s161
      %s178 = sphi 0, %s162
    $region4: #{tpu_custom_call.1} parent=1 // loop_header_branch
      %22 = sbr.rel (%p20) target = $region8
    $region5: #{tpu_custom_call.1} parent=1 // loop_body
      %s24 = ssub.s32 %s19, 1
      %s25 = ssub.s32 %s19, 2
      %s35 = sadd.s32 1, %s28
      %p36 = scmp.ge.s32.totalorder %s35, 3
      %s37 = scalar_select %p36, 0, %s35
      %s38 = sadd.s32 1, %s27
      %s39 = scalar_select %p36, %s38, %s27
      %p40 = scmp.ge.s32.totalorder %s39, 2
      %s41 = scalar_select %p40, 0, %s39
      %s42 = sadd.s32 1, %s26
      %s43 = scalar_select %p40, %s42, %s26
      %p44 = scmp.ge.s32.totalorder %s43, 1
      %s45 = scalar_select %p44, 0, %s43
      %s46 = ssub.s32 %s26, %s45
      %s47 = ssub.s32 %s28, %s37
      %s48 = sor.u32 %s46, %s47
      %p49 = scmp.eq.s32.totalorder %s48, 0
      %s51 = sadd.s32 %s50, 1
      %s52 = scalar_select %p49, %s50, %s51
      %p55 = pneg %p49
      %p56 = scmp.eq.s32.totalorder %s19, 5
      %p57 = por %p55, %p56
      %p58 = scmp.ne.s32.totalorder %s50, %s53
      %p59 = scmp.eq.s32.totalorder %s19, 0
      %p60 = por %p58, %p59
      %p61 = scmp.ne.s32.totalorder %s50, %s53
      %p62 = scmp.eq.s32.totalorder %s24, 5
      %p63 = por %p61, %p62
      %p64 = scmp.ne.s32.totalorder %s53, %s54
      %p65 = scmp.eq.s32.totalorder %s24, 0
      %p66 = por %p64, %p65
      %p67 = scmp.ne.s32.totalorder %s53, %s54
      %p68 = scmp.eq.s32.totalorder %s25, 5
      %p69 = por %p67, %p68
      %p71 = scmp.ne.s32.totalorder %s54, %s70
      %p72 = scmp.eq.s32.totalorder %s25, 0
      %p73 = por %p71, %p72
      %s74 = ssub.s32 %s27, %s41
      %s75 = ssub.s32 %s28, %s37
      %s76 = sor.u32 %s74, %s75
      %p77 = scmp.eq.s32.totalorder %s76, 0
      %s79 = sadd.s32 %s78, 1
      %s80 = scalar_select %p77, %s78, %s79
      %p83 = pneg %p77
      %p84 = scmp.eq.s32.totalorder %s19, 5
      %p85 = por %p83, %p84
      %p86 = scmp.ne.s32.totalorder %s78, %s81
      %p87 = scmp.eq.s32.totalorder %s19, 0
      %p88 = por %p86, %p87
      %p89 = scmp.ne.s32.totalorder %s78, %s81
      %p90 = scmp.eq.s32.totalorder %s24, 5
      %p91 = por %p89, %p90
      %p92 = scmp.ne.s32.totalorder %s81, %s82
      %p93 = scmp.eq.s32.totalorder %s24, 0
      %p94 = por %p92, %p93
      %p95 = scmp.ne.s32.totalorder %s81, %s82
      %p96 = scmp.eq.s32.totalorder %s25, 5
      %p97 = por %p95, %p96
      %p99 = scmp.ne.s32.totalorder %s82, %s98
      %p100 = scmp.eq.s32.totalorder %s25, 0
      %p101 = por %p99, %p100
      %s102 = ssub.s32 %s26, %s45
      %p103 = scmp.eq.s32.totalorder %s102, 0
      %s105 = sadd.s32 %s104, 1
      %s106 = scalar_select %p103, %s104, %s105
      %p109 = pneg %p103
      %p110 = scmp.eq.s32.totalorder %s19, 5
      %p111 = por %p109, %p110
      %p112 = scmp.ne.s32.totalorder %s104, %s107
      %p113 = scmp.eq.s32.totalorder %s19, 0
      %p114 = por %p112, %p113
      %p115 = scmp.ne.s32.totalorder %s104, %s107
      %p116 = scmp.eq.s32.totalorder %s24, 5
      %p117 = por %p115, %p116
      %p118 = scmp.ne.s32.totalorder %s107, %s108
      %p119 = scmp.eq.s32.totalorder %s24, 0
      %p120 = por %p118, %p119
      %p121 = scmp.ne.s32.totalorder %s107, %s108
      %p122 = scmp.eq.s32.totalorder %s25, 5
      %p123 = por %p121, %p122
      %p125 = scmp.ne.s32.totalorder %s108, %s124
      %p126 = scmp.eq.s32.totalorder %s25, 0
      %p127 = por %p125, %p126
      %s128 = ssub.s32 %s27, %s41
      %p129 = scmp.eq.s32.totalorder %s128, 0
      %s131 = sadd.s32 %s130, 1
      %s132 = scalar_select %p129, %s130, %s131
      %p135 = pneg %p129
      %p136 = scmp.eq.s32.totalorder %s19, 5
      %p137 = por %p135, %p136
      %p138 = scmp.ne.s32.totalorder %s130, %s133
      %p139 = scmp.eq.s32.totalorder %s19, 0
      %p140 = por %p138, %p139
      %p141 = scmp.ne.s32.totalorder %s130, %s133
      %p142 = scmp.eq.s32.totalorder %s24, 5
      %p143 = por %p141, %p142
      %p144 = scmp.ne.s32.totalorder %s133, %s134
      %p145 = scmp.eq.s32.totalorder %s24, 0
      %p146 = por %p144, %p145
      %p147 = scmp.ne.s32.totalorder %s133, %s134
      %p148 = scmp.eq.s32.totalorder %s25, 5
      %p149 = por %p147, %p148
      %p151 = scmp.ne.s32.totalorder %s134, %s150
      %p152 = scmp.eq.s32.totalorder %s25, 0
      %p153 = por %p151, %p152
      %s154 = ssub.s32 %s26, %s45
      %s155 = ssub.s32 %s27, %s41
      %s156 = sor.u32 %s154, %s155
      %p157 = scmp.eq.s32.totalorder %s156, 0
      %s159 = sadd.s32 %s158, 1
      %s160 = scalar_select %p157, %s158, %s159
      %p163 = pneg %p157
      %p164 = scmp.eq.s32.totalorder %s19, 5
      %p165 = por %p163, %p164
      %p166 = scmp.ne.s32.totalorder %s158, %s161
      %p167 = scmp.eq.s32.totalorder %s19, 0
      %p168 = por %p166, %p167
      %p169 = scmp.ne.s32.totalorder %s158, %s161
      %p170 = scmp.eq.s32.totalorder %s24, 5
      %p171 = por %p169, %p170
      %p172 = scmp.ne.s32.totalorder %s161, %s162
      %p173 = scmp.eq.s32.totalorder %s24, 0
      %p174 = por %p172, %p173
      %p175 = scmp.ne.s32.totalorder %s161, %s162
      %p176 = scmp.eq.s32.totalorder %s25, 5
      %p177 = por %p175, %p176
      %p179 = scmp.ne.s32.totalorder %s162, %s178
      %p180 = scmp.eq.s32.totalorder %s25, 0
      %p181 = por %p179, %p180
      %p182 = scmp.le.s32.totalorder 1, %s19
      %p183 = scmp.lt.s32.totalorder %s19, 7
      %p184 = pnand %p182, %p183
      %p185 = pneg %p184
      // Predicated region
      $region9: #{tpu_custom_call.1} parent=5 // pred_check
        _
      $region10: #{tpu_custom_call.1} parent=5 // pred_check_branch
        %187 = sbr.rel (%p184) target = $region12
      $region11: #{tpu_custom_call.1} parent=5 // pred_region
        %s188 = ssub.s32 %s19, 1
        // Predicated region
        $region13: #{tpu_custom_call.1} parent=11 // pred_check
          %p189 = pneg %p120
        $region14: #{tpu_custom_call.1} parent=11 // pred_check_branch
          %191 = sbr.rel (%p189) target = $region16
        $region15: #{tpu_custom_call.1} parent=11 // pred_region
          %s192 = smul.u32 16, %s29
          %p193 = scmp.lt.s32.totalorder %s192, 15
          %s194 = scalar_select %p193, %s192, 15
          %s195 = smul.addr %s194, 8
          %s196 = scalar_lea.vmem %s2, %s195
          %s197 = smul.u32 16, %s29
        $region16: #{tpu_custom_call.1} parent=11 // pred_fallthru
          _
      $region12: #{tpu_custom_call.1} parent=5 // pred_fallthru
        _
      %p198 = scmp.lt.s32.totalorder %s19, 6
      // Predicated region
      $region17: #{tpu_custom_call.1} parent=5 // pred_check
        %p199 = pneg %p198
      $region18: #{tpu_custom_call.1} parent=5 // pred_check_branch
        %201 = sbr.rel (%p199) target = $region20
      $region19: #{tpu_custom_call.1} parent=5 // pred_region
        // Predicated region
        $region21: #{tpu_custom_call.1} parent=19 // pred_check
          %p202 = pneg %p60
        $region22: #{tpu_custom_call.1} parent=19 // pred_check_branch
          %204 = sbr.rel (%p202) target = $region24
        $region23: #{tpu_custom_call.1} parent=19 // pred_region
          %s205 = sand.u32 %s50, 1
          %s206 = scalar_lea.sflag [#allocation3], %s205
          %s207 = sand.u32 %s50, 1
          %s208 = smul.addr %s207, 256
          %s209 = scalar_lea.vmem [#allocation2], %s208
          %s210 = smul.u32 16, %s26
          %s211 = smul.u32 4, %s28
          %s213 = ssub.s32 4096, 4096
          %214 = vsyncadd %s206, %s213
          %s215 = smul.addr %s210, 12
          %s216 = sadd.s32 %s211, %s215
          %s217 = smul.addr %s216, 64
          %s218 = scalar_lea.hbm %s0, %s217
          %s219 = sshll.u32 %s209, 4
          %s220 = int_to_ptr.vmem [resolvable:$true] %s219
          %225 = dma.hbm_to_vmem [thread:$0]  %s218, 4096, %s220, %s206, 768, 256, 16
        $region24: #{tpu_custom_call.1} parent=19 // pred_fallthru
          _
        // Predicated region
        $region25: #{tpu_custom_call.1} parent=19 // pred_check
          %p226 = pneg %p88
        $region26: #{tpu_custom_call.1} parent=19 // pred_check_branch
          %228 = sbr.rel (%p226) target = $region28
        $region27: #{tpu_custom_call.1} parent=19 // pred_region
          %s229 = sand.u32 %s78, 1
          %s230 = scalar_lea.sflag [#allocation6], %s229
          %s231 = sand.u32 %s78, 1
          %s232 = smul.addr %s231, 256
          %s233 = scalar_lea.vmem [#allocation5], %s232
          %s234 = smul.u32 16, %s27
          %s235 = smul.u32 4, %s28
          %s237 = ssub.s32 4096, 4096
          %238 = vsyncadd %s230, %s237
          %s239 = smul.addr %s234, 12
          %s240 = sadd.s32 %s235, %s239
          %s241 = smul.addr %s240, 64
          %s242 = scalar_lea.hbm %s1, %s241
          %s243 = sshll.u32 %s233, 4
          %s244 = int_to_ptr.vmem [resolvable:$true] %s243
          %249 = dma.hbm_to_vmem [thread:$0]  %s242, 4096, %s244, %s230, 768, 256, 16
        $region28: #{tpu_custom_call.1} parent=19 // pred_fallthru
          _
        // Predicated region
        $region29: #{tpu_custom_call.1} parent=19 // pred_check
          %p250 = pneg %p140
        $region30: #{tpu_custom_call.1} parent=19 // pred_check_branch
          %252 = sbr.rel (%p250) target = $region32
        $region31: #{tpu_custom_call.1} parent=19 // pred_region
          %p253 = scmp.lt.s32.totalorder %s27, 1
          %s254 = scalar_select %p253, %s27, 1
          %s255 = scalar_lea.vmem %s3, %s254
        $region32: #{tpu_custom_call.1} parent=19 // pred_fallthru
          _
      $region20: #{tpu_custom_call.1} parent=5 // pred_fallthru
        _
      %p256 = scmp.le.s32.totalorder 1, %s19
      %p257 = scmp.lt.s32.totalorder %s19, 7
      %p258 = pnand %p256, %p257
      %p259 = pneg %p258
      // Predicated region
      $region33: #{tpu_custom_call.1} parent=5 // pred_check
        _
      $region34: #{tpu_custom_call.1} parent=5 // pred_check_branch
        %261 = sbr.rel (%p258) target = $region36
      $region35: #{tpu_custom_call.1} parent=5 // pred_region
        %s262 = ssub.s32 %s19, 1
        %s263 = sand.u32 %s53, 1
        %s264 = scalar_lea.sflag [#allocation3], %s263
        %s265 = sand.u32 %s53, 1
        %s266 = smul.addr %s265, 256
        %s267 = scalar_lea.vmem [#allocation2], %s266
        // Predicated region
        $region37: #{tpu_custom_call.1} parent=35 // pred_check
          %p268 = pneg %p66
        $region38: #{tpu_custom_call.1} parent=35 // pred_check_branch
          %270 = sbr.rel (%p268) target = $region40
        $region39: #{tpu_custom_call.1} parent=35 // pred_region
          %271 = dma.done %s264, 4096
        $region40: #{tpu_custom_call.1} parent=35 // pred_fallthru
          _
        %s272 = sand.u32 %s81, 1
        %s273 = scalar_lea.sflag [#allocation6], %s272
        %s274 = sand.u32 %s81, 1
        %s275 = smul.addr %s274, 256
        %s276 = scalar_lea.vmem [#allocation5], %s275
        // Predicated region
        $region41: #{tpu_custom_call.1} parent=35 // pred_check
          %p277 = pneg %p94
        $region42: #{tpu_custom_call.1} parent=35 // pred_check_branch
          %279 = sbr.rel (%p277) target = $region44
        $region43: #{tpu_custom_call.1} parent=35 // pred_region
          %280 = dma.done %s273, 4096
        $region44: #{tpu_custom_call.1} parent=35 // pred_fallthru
          _
        %s281 = sand.u32 %s53, 1
        %s282 = scalar_lea.sflag [#allocation3], %s281
        %s283 = sand.u32 %s53, 1
        %s284 = smul.addr %s283, 256
        %s285 = scalar_lea.vmem [#allocation2], %s284
        %p286 = pneg %p66
        %p287 = pneg %p63
        %s288 = sand.u32 %s81, 1
        %s289 = scalar_lea.sflag [#allocation6], %s288
        %s290 = sand.u32 %s81, 1
        %s291 = smul.addr %s290, 256
        %s292 = scalar_lea.vmem [#allocation5], %s291
        %p293 = pneg %p94
        %p294 = pneg %p91
        %s295 = smul.u32 16, %s29
        %p296 = scmp.lt.s32.totalorder %s295, 15
        %s297 = scalar_select %p296, %s295, 15
        %s298 = smul.addr %s297, 8
        %s299 = scalar_lea.vmem %s2, %s298
        %p300 = pneg %p120
        %p301 = pneg %p117
        %p302 = scmp.lt.s32.totalorder %s30, 1
        %s303 = scalar_select %p302, %s30, 1
        %s304 = scalar_lea.vmem %s3, %s303
        %p305 = pneg %p146
        %p306 = pneg %p143
        %p307 = pneg %p174
        %p308 = pneg %p171
        %s309 = sand.u32 %s161, 1
        %s310 = scalar_lea.sflag [#allocation4], %s309
        %s311 = sand.u32 %s161, 1
        %s312 = smul.addr %s311, 128
        %s313 = scalar_lea.vmem [#allocation7], %s312
        %s314 = smul.u32 16, %s29
        %s315 = smul.u32 4, %s31
        %s316 = smul.u32 16, %s30
        %s317 = smul.u32 4, %s31
        %s318 = smul.u32 16, %s29
        %p319 = scmp.lt.s32.totalorder %s318, 15
        %s320 = scalar_select %p319, %s318, 15
        %s321 = smul.addr %s320, 8
        %s322 = scalar_lea.vmem %s2, %s321
        %s323 = smul.u32 16, %s29
        %p324 = scmp.lt.s32.totalorder %s30, 1
        %s325 = scalar_select %p324, %s30, 1
        %s326 = scalar_lea.vmem %s3, %s325
        %s327 = smul.u32 16, %s29
        %p329 = scmp.eq.s32.totalorder %s31, 0
        // Predicated region
        $region45: #{tpu_custom_call.1} parent=35 // pred_check
          %p330 = pneg %p329
        $region46: #{tpu_custom_call.1} parent=35 // pred_check_branch
          %332 = sbr.rel (%p330) target = $region48
        $region47: #{tpu_custom_call.1} parent=35 // pred_region
          %333 = vst [vmem:[%s313] sm:$0xff] 0.0
          %334 = vst [vmem:[%s313 + $0x8] sm:$0xff] 0.0
          %335 = vst [vmem:[%s313 + $0x10] sm:$0xff] 0.0
          %336 = vst [vmem:[%s313 + $0x18] sm:$0xff] 0.0
          %337 = vst [vmem:[%s313 + $0x20] sm:$0xff] 0.0
          %338 = vst [vmem:[%s313 + $0x28] sm:$0xff] 0.0
          %339 = vst [vmem:[%s313 + $0x30] sm:$0xff] 0.0
          %340 = vst [vmem:[%s313 + $0x38] sm:$0xff] 0.0
          %341 = vst [vmem:[%s313 + $0x40] sm:$0xff] 0.0
          %342 = vst [vmem:[%s313 + $0x48] sm:$0xff] 0.0
          %343 = vst [vmem:[%s313 + $0x50] sm:$0xff] 0.0
          %344 = vst [vmem:[%s313 + $0x58] sm:$0xff] 0.0
          %345 = vst [vmem:[%s313 + $0x60] sm:$0xff] 0.0
          %346 = vst [vmem:[%s313 + $0x68] sm:$0xff] 0.0
          %347 = vst [vmem:[%s313 + $0x70] sm:$0xff] 0.0
          %348 = vst [vmem:[%s313 + $0x78] sm:$0xff] 0.0
        $region48: #{tpu_custom_call.1} parent=35 // pred_fallthru
          _
        %v349 = vld [vmem:[%s313] sm:$0xff]
        %v350 = vld [vmem:[%s313 + $0x8] sm:$0xff]
        %v351 = vld [vmem:[%s313 + $0x10] sm:$0xff]
        %v352 = vld [vmem:[%s313 + $0x18] sm:$0xff]
        %v353 = vld [vmem:[%s313 + $0x20] sm:$0xff]
        %v354 = vld [vmem:[%s313 + $0x28] sm:$0xff]
        %v355 = vld [vmem:[%s313 + $0x30] sm:$0xff]
        %v356 = vld [vmem:[%s313 + $0x38] sm:$0xff]
        %v357 = vld [vmem:[%s313 + $0x40] sm:$0xff]
        %v358 = vld [vmem:[%s313 + $0x48] sm:$0xff]
        %v359 = vld [vmem:[%s313 + $0x50] sm:$0xff]
        %v360 = vld [vmem:[%s313 + $0x58] sm:$0xff]
        %v361 = vld [vmem:[%s313 + $0x60] sm:$0xff]
        %v362 = vld [vmem:[%s313 + $0x68] sm:$0xff]
        %v363 = vld [vmem:[%s313 + $0x70] sm:$0xff]
        %v364 = vld [vmem:[%s313 + $0x78] sm:$0xff]
        %v365 = vld [vmem:[%s267] sm:$0xff]
        %v366 = vld [vmem:[%s267 + $0x8] sm:$0xff]
        %v367 = vld [vmem:[%s267 + $0x10] sm:$0xff]
        %v368 = vld [vmem:[%s267 + $0x18] sm:$0xff]
        %v369 = vld [vmem:[%s267 + $0x20] sm:$0xff]
        %v370 = vld [vmem:[%s267 + $0x28] sm:$0xff]
        %v371 = vld [vmem:[%s267 + $0x30] sm:$0xff]
        %v372 = vld [vmem:[%s267 + $0x38] sm:$0xff]
        %v373 = vld [vmem:[%s267 + $0x40] sm:$0xff]
        %v374 = vld [vmem:[%s267 + $0x48] sm:$0xff]
        %v375 = vld [vmem:[%s267 + $0x50] sm:$0xff]
        %v376 = vld [vmem:[%s267 + $0x58] sm:$0xff]
        %v377 = vld [vmem:[%s267 + $0x60] sm:$0xff]
        %v378 = vld [vmem:[%s267 + $0x68] sm:$0xff]
        %v379 = vld [vmem:[%s267 + $0x70] sm:$0xff]
        %v380 = vld [vmem:[%s267 + $0x78] sm:$0xff]
        %v381 = vld [vmem:[%s267 + $0x80] sm:$0xff]
        %v382 = vld [vmem:[%s267 + $0x88] sm:$0xff]
        %v383 = vld [vmem:[%s267 + $0x90] sm:$0xff]
        %v384 = vld [vmem:[%s267 + $0x98] sm:$0xff]
        %v385 = vld [vmem:[%s267 + $0xa0] sm:$0xff]
        %v386 = vld [vmem:[%s267 + $0xa8] sm:$0xff]
        %v387 = vld [vmem:[%s267 + $0xb0] sm:$0xff]
        %v388 = vld [vmem:[%s267 + $0xb8] sm:$0xff]
        %v389 = vld [vmem:[%s267 + $0xc0] sm:$0xff]
        %v390 = vld [vmem:[%s267 + $0xc8] sm:$0xff]
        %v391 = vld [vmem:[%s267 + $0xd0] sm:$0xff]
        %v392 = vld [vmem:[%s267 + $0xd8] sm:$0xff]
        %v393 = vld [vmem:[%s267 + $0xe0] sm:$0xff]
        %v394 = vld [vmem:[%s267 + $0xe8] sm:$0xff]
        %v395 = vld [vmem:[%s267 + $0xf0] sm:$0xff]
        %v396 = vld [vmem:[%s267 + $0xf8] sm:$0xff]
        %v397 = vld [vmem:[%s276] sm:$0xff]
        %v398 = vld [vmem:[%s276 + $0x8] sm:$0xff]
        %v399 = vld [vmem:[%s276 + $0x10] sm:$0xff]
        %v400 = vld [vmem:[%s276 + $0x18] sm:$0xff]
        %v401 = vld [vmem:[%s276 + $0x20] sm:$0xff]
        %v402 = vld [vmem:[%s276 + $0x28] sm:$0xff]
        %v403 = vld [vmem:[%s276 + $0x30] sm:$0xff]
        %v404 = vld [vmem:[%s276 + $0x38] sm:$0xff]
        %v405 = vld [vmem:[%s276 + $0x40] sm:$0xff]
        %v406 = vld [vmem:[%s276 + $0x48] sm:$0xff]
        %v407 = vld [vmem:[%s276 + $0x50] sm:$0xff]
        %v408 = vld [vmem:[%s276 + $0x58] sm:$0xff]
        %v409 = vld [vmem:[%s276 + $0x60] sm:$0xff]
        %v410 = vld [vmem:[%s276 + $0x68] sm:$0xff]
        %v411 = vld [vmem:[%s276 + $0x70] sm:$0xff]
        %v412 = vld [vmem:[%s276 + $0x78] sm:$0xff]
        %v413 = vld [vmem:[%s276 + $0x80] sm:$0xff]
        %v414 = vld [vmem:[%s276 + $0x88] sm:$0xff]
        %v415 = vld [vmem:[%s276 + $0x90] sm:$0xff]
        %v416 = vld [vmem:[%s276 + $0x98] sm:$0xff]
        %v417 = vld [vmem:[%s276 + $0xa0] sm:$0xff]
        %v418 = vld [vmem:[%s276 + $0xa8] sm:$0xff]
        %v419 = vld [vmem:[%s276 + $0xb0] sm:$0xff]
        %v420 = vld [vmem:[%s276 + $0xb8] sm:$0xff]
        %v421 = vld [vmem:[%s276 + $0xc0] sm:$0xff]
        %v422 = vld [vmem:[%s276 + $0xc8] sm:$0xff]
        %v423 = vld [vmem:[%s276 + $0xd0] sm:$0xff]
        %v424 = vld [vmem:[%s276 + $0xd8] sm:$0xff]
        %v425 = vld [vmem:[%s276 + $0xe0] sm:$0xff]
        %v426 = vld [vmem:[%s276 + $0xe8] sm:$0xff]
        %v427 = vld [vmem:[%s276 + $0xf0] sm:$0xff]
        %v428 = vld [vmem:[%s276 + $0xf8] sm:$0xff]
        %v461 = vunpack.c.l.b16 %v365
        %v462 = vunpack.c.h.b16 %v365
        %v463 = vunpack.c.l.b16 %v366
        %v464 = vunpack.c.h.b16 %v366
        %v465 = vunpack.c.l.b16 %v367
        %v466 = vunpack.c.h.b16 %v367
        %v467 = vunpack.c.l.b16 %v368
        %v468 = vunpack.c.h.b16 %v368
        %v469 = vunpack.c.l.b16 %v369
        %v470 = vunpack.c.h.b16 %v369
        %v471 = vunpack.c.l.b16 %v370
        %v472 = vunpack.c.h.b16 %v370
        %v473 = vunpack.c.l.b16 %v371
        %v474 = vunpack.c.h.b16 %v371
        %v475 = vunpack.c.l.b16 %v372
        %v476 = vunpack.c.h.b16 %v372
        %v477 = vunpack.c.l.b16 %v373
        %v478 = vunpack.c.h.b16 %v373
        %v479 = vunpack.c.l.b16 %v374
        %v480 = vunpack.c.h.b16 %v374
        %v481 = vunpack.c.l.b16 %v375
        %v482 = vunpack.c.h.b16 %v375
        %v483 = vunpack.c.l.b16 %v376
        %v484 = vunpack.c.h.b16 %v376
        %v485 = vunpack.c.l.b16 %v377
        %v486 = vunpack.c.h.b16 %v377
        %v487 = vunpack.c.l.b16 %v378
        %v488 = vunpack.c.h.b16 %v378
        %v489 = vunpack.c.l.b16 %v379
        %v490 = vunpack.c.h.b16 %v379
        %v491 = vunpack.c.l.b16 %v380
        %v492 = vunpack.c.h.b16 %v380
        %v493 = vunpack.c.l.b16 %v381
        %v494 = vunpack.c.h.b16 %v381
        %v495 = vunpack.c.l.b16 %v382
        %v496 = vunpack.c.h.b16 %v382
        %v497 = vunpack.c.l.b16 %v383
        %v498 = vunpack.c.h.b16 %v383
        %v499 = vunpack.c.l.b16 %v384
        %v500 = vunpack.c.h.b16 %v384
        %v501 = vunpack.c.l.b16 %v385
        %v502 = vunpack.c.h.b16 %v385
        %v503 = vunpack.c.l.b16 %v386
        %v504 = vunpack.c.h.b16 %v386
        %v505 = vunpack.c.l.b16 %v387
        %v506 = vunpack.c.h.b16 %v387
        %v507 = vunpack.c.l.b16 %v388
        %v508 = vunpack.c.h.b16 %v388
        %v509 = vunpack.c.l.b16 %v389
        %v510 = vunpack.c.h.b16 %v389
        %v511 = vunpack.c.l.b16 %v390
        %v512 = vunpack.c.h.b16 %v390
        %v513 = vunpack.c.l.b16 %v391
        %v514 = vunpack.c.h.b16 %v391
        %v515 = vunpack.c.l.b16 %v392
        %v516 = vunpack.c.h.b16 %v392
        %v517 = vunpack.c.l.b16 %v393
        %v518 = vunpack.c.h.b16 %v393
        %v519 = vunpack.c.l.b16 %v394
        %v520 = vunpack.c.h.b16 %v394
        %v521 = vunpack.c.l.b16 %v395
        %v522 = vunpack.c.h.b16 %v395
        %v523 = vunpack.c.l.b16 %v396
        %v524 = vunpack.c.h.b16 %v396
        %v525 = vpack.c.b16 %v465, %v461
        %v526 = vpack.c.b16 %v466, %v462
        %v527 = vpack.c.b16 %v467, %v463
        %v528 = vpack.c.b16 %v468, %v464
        %v529 = vpack.c.b16 %v473, %v469
        %v530 = vpack.c.b16 %v474, %v470
        %v531 = vpack.c.b16 %v475, %v471
        %v532 = vpack.c.b16 %v476, %v472
        %v533 = vpack.c.b16 %v481, %v477
        %v534 = vpack.c.b16 %v482, %v478
        %v535 = vpack.c.b16 %v483, %v479
        %v536 = vpack.c.b16 %v484, %v480
        %v537 = vpack.c.b16 %v489, %v485
        %v538 = vpack.c.b16 %v490, %v486
        %v539 = vpack.c.b16 %v491, %v487
        %v540 = vpack.c.b16 %v492, %v488
        %v541 = vpack.c.b16 %v497, %v493
        %v542 = vpack.c.b16 %v498, %v494
        %v543 = vpack.c.b16 %v499, %v495
        %v544 = vpack.c.b16 %v500, %v496
        %v545 = vpack.c.b16 %v505, %v501
        %v546 = vpack.c.b16 %v506, %v502
        %v547 = vpack.c.b16 %v507, %v503
        %v548 = vpack.c.b16 %v508, %v504
        %v549 = vpack.c.b16 %v513, %v509
        %v550 = vpack.c.b16 %v514, %v510
        %v551 = vpack.c.b16 %v515, %v511
        %v552 = vpack.c.b16 %v516, %v512
        %v553 = vpack.c.b16 %v521, %v517
        %v554 = vpack.c.b16 %v522, %v518
        %v555 = vpack.c.b16 %v523, %v519
        %v556 = vpack.c.b16 %v524, %v520
        %v621 = vunpack.c.l.b16 %v397
        %v622 = vunpack.c.h.b16 %v397
        %v623 = vunpack.c.l.b16 %v398
        %v624 = vunpack.c.h.b16 %v398
        %v625 = vunpack.c.l.b16 %v399
        %v626 = vunpack.c.h.b16 %v399
        %v627 = vunpack.c.l.b16 %v400
        %v628 = vunpack.c.h.b16 %v400
        %v629 = vunpack.c.l.b16 %v401
        %v630 = vunpack.c.h.b16 %v401
        %v631 = vunpack.c.l.b16 %v402
        %v632 = vunpack.c.h.b16 %v402
        %v633 = vunpack.c.l.b16 %v403
        %v634 = vunpack.c.h.b16 %v403
        %v635 = vunpack.c.l.b16 %v404
        %v636 = vunpack.c.h.b16 %v404
        %v637 = vunpack.c.l.b16 %v405
        %v638 = vunpack.c.h.b16 %v405
        %v639 = vunpack.c.l.b16 %v406
        %v640 = vunpack.c.h.b16 %v406
        %v641 = vunpack.c.l.b16 %v407
        %v642 = vunpack.c.h.b16 %v407
        %v643 = vunpack.c.l.b16 %v408
        %v644 = vunpack.c.h.b16 %v408
        %v645 = vunpack.c.l.b16 %v409
        %v646 = vunpack.c.h.b16 %v409
        %v647 = vunpack.c.l.b16 %v410
        %v648 = vunpack.c.h.b16 %v410
        %v649 = vunpack.c.l.b16 %v411
        %v650 = vunpack.c.h.b16 %v411
        %v651 = vunpack.c.l.b16 %v412
        %v652 = vunpack.c.h.b16 %v412
        %v653 = vunpack.c.l.b16 %v413
        %v654 = vunpack.c.h.b16 %v413
        %v655 = vunpack.c.l.b16 %v414
        %v656 = vunpack.c.h.b16 %v414
        %v657 = vunpack.c.l.b16 %v415
        %v658 = vunpack.c.h.b16 %v415
        %v659 = vunpack.c.l.b16 %v416
        %v660 = vunpack.c.h.b16 %v416
        %v661 = vunpack.c.l.b16 %v417
        %v662 = vunpack.c.h.b16 %v417
        %v663 = vunpack.c.l.b16 %v418
        %v664 = vunpack.c.h.b16 %v418
        %v665 = vunpack.c.l.b16 %v419
        %v666 = vunpack.c.h.b16 %v419
        %v667 = vunpack.c.l.b16 %v420
        %v668 = vunpack.c.h.b16 %v420
        %v669 = vunpack.c.l.b16 %v421
        %v670 = vunpack.c.h.b16 %v421
        %v671 = vunpack.c.l.b16 %v422
        %v672 = vunpack.c.h.b16 %v422
        %v673 = vunpack.c.l.b16 %v423
        %v674 = vunpack.c.h.b16 %v423
        %v675 = vunpack.c.l.b16 %v424
        %v676 = vunpack.c.h.b16 %v424
        %v677 = vunpack.c.l.b16 %v425
        %v678 = vunpack.c.h.b16 %v425
        %v679 = vunpack.c.l.b16 %v426
        %v680 = vunpack.c.h.b16 %v426
        %v681 = vunpack.c.l.b16 %v427
        %v682 = vunpack.c.h.b16 %v427
        %v683 = vunpack.c.l.b16 %v428
        %v684 = vunpack.c.h.b16 %v428
        %v685 = vpack.c.b16 %v625, %v621
        %v686 = vpack.c.b16 %v626, %v622
        %v687 = vpack.c.b16 %v627, %v623
        %v688 = vpack.c.b16 %v628, %v624
        %v689 = vpack.c.b16 %v633, %v629
        %v690 = vpack.c.b16 %v634, %v630
        %v691 = vpack.c.b16 %v635, %v631
        %v692 = vpack.c.b16 %v636, %v632
        %v693 = vpack.c.b16 %v641, %v637
        %v694 = vpack.c.b16 %v642, %v638
        %v695 = vpack.c.b16 %v643, %v639
        %v696 = vpack.c.b16 %v644, %v640
        %v697 = vpack.c.b16 %v649, %v645
        %v698 = vpack.c.b16 %v650, %v646
        %v699 = vpack.c.b16 %v651, %v647
        %v700 = vpack.c.b16 %v652, %v648
        %v701 = vpack.c.b16 %v657, %v653
        %v702 = vpack.c.b16 %v658, %v654
        %v703 = vpack.c.b16 %v659, %v655
        %v704 = vpack.c.b16 %v660, %v656
        %v705 = vpack.c.b16 %v665, %v661
        %v706 = vpack.c.b16 %v666, %v662
        %v707 = vpack.c.b16 %v667, %v663
        %v708 = vpack.c.b16 %v668, %v664
        %v709 = vpack.c.b16 %v673, %v669
        %v710 = vpack.c.b16 %v674, %v670
        %v711 = vpack.c.b16 %v675, %v671
        %v712 = vpack.c.b16 %v676, %v672
        %v713 = vpack.c.b16 %v681, %v677
        %v714 = vpack.c.b16 %v682, %v678
        %v715 = vpack.c.b16 %v683, %v679
        %v716 = vpack.c.b16 %v684, %v680
        %749 = vmatprep.subr.bf16.mxu0 %v714
        %750 = vmatpush1.bf16.xpose.msra.mxu0 %v713
        %751 = vmatprep.subr.bf16.mxu0 %v710
        %752 = vmatpush1.bf16.xpose.msra.mxu0 %v709
        %753 = vmatprep.subr.bf16.mxu0 %v706
        %754 = vmatpush1.bf16.xpose.msra.mxu0 %v705
        %755 = vmatprep.subr.bf16.mxu0 %v702
        %756 = vmatpush1.bf16.xpose.msra.mxu0 %v701
        %757 = vmatprep.subr.bf16.mxu0 %v698
        %758 = vmatpush1.bf16.xpose.msra.mxu0 %v697
        %759 = vmatprep.subr.bf16.mxu0 %v694
        %760 = vmatpush1.bf16.xpose.msra.mxu0 %v693
        %761 = vmatprep.subr.bf16.mxu0 %v690
        %762 = vmatpush1.bf16.xpose.msra.mxu0 %v689
        %763 = vmatprep.subr.bf16.mxu0 %v686
        %764 = vmatpush1.bf16.xpose.msra.mxu0 %v685
        %765 = vmatprep.subr.bf16.mxu0 0
        %766 = vmatpush2.bf16.xpose.msra.mxu0 0
        %767 = vmatprep.subr.bf16.mxu0 0
        %768 = vmatpush2.bf16.xpose.msra.mxu0 0
        %769 = vmatprep.subr.bf16.mxu0 0
        %770 = vmatpush2.bf16.xpose.msra.mxu0 0
        %771 = vmatprep.subr.bf16.mxu0 0
        %772 = vmatpush2.bf16.xpose.msra.mxu0 0
        %773 = vmatprep.subr.bf16.mxu0 0
        %774 = vmatpush2.bf16.xpose.msra.mxu0 0
        %775 = vmatprep.subr.bf16.mxu0 0
        %776 = vmatpush2.bf16.xpose.msra.mxu0 0
        %777 = vmatprep.subr.bf16.mxu0 0
        %778 = vmatpush2.bf16.xpose.msra.mxu0 0
        %779 = vmatprep.subr.bf16.mxu0 0
        %780 = vmatpush2.bf16.xpose.msra.mxu0 0
        %781 = vmatprep.mubr.bf16.mxu0 %v526
        %782 = vmatmul.mubr.bf16.gmra.mxu0 %v525
        %v783 = vpop.f32.mrf.mxu0
        %v784 = vadd.f32 0.0, %v783
        %v785 = vpop.f32.mrf.mxu0
        %v786 = vpop.f32.mrf.mxu0
        %v787 = vadd.f32 0.0, %v786
        %v788 = vpop.f32.mrf.mxu0
        %789 = vmatprep.mubr.bf16.mxu0 %v530
        %790 = vmatmul.mubr.bf16.gmra.mxu0 %v529
        %v791 = vpop.f32.mrf.mxu0
        %v792 = vadd.f32 0.0, %v791
        %v793 = vpop.f32.mrf.mxu0
        %v794 = vpop.f32.mrf.mxu0
        %v795 = vadd.f32 0.0, %v794
        %v796 = vpop.f32.mrf.mxu0
        %797 = vmatprep.mubr.bf16.mxu0 %v534
        %798 = vmatmul.mubr.bf16.gmra.mxu0 %v533
        %v799 = vpop.f32.mrf.mxu0
        %v800 = vadd.f32 0.0, %v799
        %v801 = vpop.f32.mrf.mxu0
        %v802 = vpop.f32.mrf.mxu0
        %v803 = vadd.f32 0.0, %v802
        %v804 = vpop.f32.mrf.mxu0
        %805 = vmatprep.mubr.bf16.mxu0 %v538
        %806 = vmatmul.mubr.bf16.gmra.mxu0 %v537
        %v807 = vpop.f32.mrf.mxu0
        %v808 = vadd.f32 0.0, %v807
        %v809 = vpop.f32.mrf.mxu0
        %v810 = vpop.f32.mrf.mxu0
        %v811 = vadd.f32 0.0, %v810
        %v812 = vpop.f32.mrf.mxu0
        %813 = vmatprep.mubr.bf16.mxu0 %v542
        %814 = vmatmul.mubr.bf16.gmra.mxu0 %v541
        %v815 = vpop.f32.mrf.mxu0
        %v816 = vadd.f32 0.0, %v815
        %v817 = vpop.f32.mrf.mxu0
        %v818 = vpop.f32.mrf.mxu0
        %v819 = vadd.f32 0.0, %v818
        %v820 = vpop.f32.mrf.mxu0
        %821 = vmatprep.mubr.bf16.mxu0 %v546
        %822 = vmatmul.mubr.bf16.gmra.mxu0 %v545
        %v823 = vpop.f32.mrf.mxu0
        %v824 = vadd.f32 0.0, %v823
        %v825 = vpop.f32.mrf.mxu0
        %v826 = vpop.f32.mrf.mxu0
        %v827 = vadd.f32 0.0, %v826
        %v828 = vpop.f32.mrf.mxu0
        %829 = vmatprep.mubr.bf16.mxu0 %v550
        %830 = vmatmul.mubr.bf16.gmra.mxu0 %v549
        %v831 = vpop.f32.mrf.mxu0
        %v832 = vadd.f32 0.0, %v831
        %v833 = vpop.f32.mrf.mxu0
        %v834 = vpop.f32.mrf.mxu0
        %v835 = vadd.f32 0.0, %v834
        %v836 = vpop.f32.mrf.mxu0
        %837 = vmatprep.mubr.bf16.mxu0 %v554
        %838 = vmatmul.mubr.bf16.gmra.mxu0 %v553
        %v839 = vpop.f32.mrf.mxu0
        %v840 = vadd.f32 0.0, %v839
        %v841 = vpop.f32.mrf.mxu0
        %v842 = vpop.f32.mrf.mxu0
        %v843 = vadd.f32 0.0, %v842
        %v844 = vpop.f32.mrf.mxu0
        %845 = vdwg.mxu0
        %846 = vmatprep.subr.bf16.mxu0 %v716
        %847 = vmatpush1.bf16.xpose.msra.mxu0 %v715
        %848 = vmatprep.subr.bf16.mxu0 %v712
        %849 = vmatpush1.bf16.xpose.msra.mxu0 %v711
        %850 = vmatprep.subr.bf16.mxu0 %v708
        %851 = vmatpush1.bf16.xpose.msra.mxu0 %v707
        %852 = vmatprep.subr.bf16.mxu0 %v704
        %853 = vmatpush1.bf16.xpose.msra.mxu0 %v703
        %854 = vmatprep.subr.bf16.mxu0 %v700
        %855 = vmatpush1.bf16.xpose.msra.mxu0 %v699
        %856 = vmatprep.subr.bf16.mxu0 %v696
        %857 = vmatpush1.bf16.xpose.msra.mxu0 %v695
        %858 = vmatprep.subr.bf16.mxu0 %v692
        %859 = vmatpush1.bf16.xpose.msra.mxu0 %v691
        %860 = vmatprep.subr.bf16.mxu0 %v688
        %861 = vmatpush1.bf16.xpose.msra.mxu0 %v687
        %862 = vmatprep.subr.bf16.mxu0 0
        %863 = vmatpush2.bf16.xpose.msra.mxu0 0
        %864 = vmatprep.subr.bf16.mxu0 0
        %865 = vmatpush2.bf16.xpose.msra.mxu0 0
        %866 = vmatprep.subr.bf16.mxu0 0
        %867 = vmatpush2.bf16.xpose.msra.mxu0 0
        %868 = vmatprep.subr.bf16.mxu0 0
        %869 = vmatpush2.bf16.xpose.msra.mxu0 0
        %870 = vmatprep.subr.bf16.mxu0 0
        %871 = vmatpush2.bf16.xpose.msra.mxu0 0
        %872 = vmatprep.subr.bf16.mxu0 0
        %873 = vmatpush2.bf16.xpose.msra.mxu0 0
        %874 = vmatprep.subr.bf16.mxu0 0
        %875 = vmatpush2.bf16.xpose.msra.mxu0 0
        %876 = vmatprep.subr.bf16.mxu0 0
        %877 = vmatpush2.bf16.xpose.msra.mxu0 0
        %878 = vmatprep.mubr.bf16.mxu0 %v528
        %879 = vmatmul.mubr.bf16.gmra.mxu0 %v527
        %v880 = vpop.f32.mrf.mxu0
        %v881 = vadd.f32 %v784, %v880
        %v882 = vpop.f32.mrf.mxu0
        %v883 = vpop.f32.mrf.mxu0
        %v884 = vadd.f32 %v787, %v883
        %v885 = vpop.f32.mrf.mxu0
        %886 = vmatprep.mubr.bf16.mxu0 %v532
        %887 = vmatmul.mubr.bf16.gmra.mxu0 %v531
        %v888 = vpop.f32.mrf.mxu0
        %v889 = vadd.f32 %v792, %v888
        %v890 = vpop.f32.mrf.mxu0
        %v891 = vpop.f32.mrf.mxu0
        %v892 = vadd.f32 %v795, %v891
        %v893 = vpop.f32.mrf.mxu0
        %894 = vmatprep.mubr.bf16.mxu0 %v536
        %895 = vmatmul.mubr.bf16.gmra.mxu0 %v535
        %v896 = vpop.f32.mrf.mxu0
        %v897 = vadd.f32 %v800, %v896
        %v898 = vpop.f32.mrf.mxu0
        %v899 = vpop.f32.mrf.mxu0
        %v900 = vadd.f32 %v803, %v899
        %v901 = vpop.f32.mrf.mxu0
        %902 = vmatprep.mubr.bf16.mxu0 %v540
        %903 = vmatmul.mubr.bf16.gmra.mxu0 %v539
        %v904 = vpop.f32.mrf.mxu0
        %v905 = vadd.f32 %v808, %v904
        %v906 = vpop.f32.mrf.mxu0
        %v907 = vpop.f32.mrf.mxu0
        %v908 = vadd.f32 %v811, %v907
        %v909 = vpop.f32.mrf.mxu0
        %910 = vmatprep.mubr.bf16.mxu0 %v544
        %911 = vmatmul.mubr.bf16.gmra.mxu0 %v543
        %v912 = vpop.f32.mrf.mxu0
        %v913 = vadd.f32 %v816, %v912
        %v914 = vpop.f32.mrf.mxu0
        %v915 = vpop.f32.mrf.mxu0
        %v916 = vadd.f32 %v819, %v915
        %v917 = vpop.f32.mrf.mxu0
        %918 = vmatprep.mubr.bf16.mxu0 %v548
        %919 = vmatmul.mubr.bf16.gmra.mxu0 %v547
        %v920 = vpop.f32.mrf.mxu0
        %v921 = vadd.f32 %v824, %v920
        %v922 = vpop.f32.mrf.mxu0
        %v923 = vpop.f32.mrf.mxu0
        %v924 = vadd.f32 %v827, %v923
        %v925 = vpop.f32.mrf.mxu0
        %926 = vmatprep.mubr.bf16.mxu0 %v552
        %927 = vmatmul.mubr.bf16.gmra.mxu0 %v551
        %v928 = vpop.f32.mrf.mxu0
        %v929 = vadd.f32 %v832, %v928
        %v930 = vpop.f32.mrf.mxu0
        %v931 = vpop.f32.mrf.mxu0
        %v932 = vadd.f32 %v835, %v931
        %v933 = vpop.f32.mrf.mxu0
        %934 = vmatprep.mubr.bf16.mxu0 %v556
        %935 = vmatmul.mubr.bf16.gmra.mxu0 %v555
        %v936 = vpop.f32.mrf.mxu0
        %v937 = vadd.f32 %v840, %v936
        %v938 = vpop.f32.mrf.mxu0
        %v939 = vpop.f32.mrf.mxu0
        %v940 = vadd.f32 %v843, %v939
        %v941 = vpop.f32.mrf.mxu0
        %942 = vdwg.mxu0
        %v943 = vadd.f32 %v349, %v881
        %v944 = vadd.f32 %v350, %v884
        %v945 = vadd.f32 %v351, %v889
        %v946 = vadd.f32 %v352, %v892
        %v947 = vadd.f32 %v353, %v897
        %v948 = vadd.f32 %v354, %v900
        %v949 = vadd.f32 %v355, %v905
        %v950 = vadd.f32 %v356, %v908
        %v951 = vadd.f32 %v357, %v913
        %v952 = vadd.f32 %v358, %v916
        %v953 = vadd.f32 %v359, %v921
        %v954 = vadd.f32 %v360, %v924
        %v955 = vadd.f32 %v361, %v929
        %v956 = vadd.f32 %v362, %v932
        %v957 = vadd.f32 %v363, %v937
        %v958 = vadd.f32 %v364, %v940
        %959 = vst [vmem:[%s313] sm:$0xff] %v943
        %960 = vst [vmem:[%s313 + $0x8] sm:$0xff] %v944
        %961 = vst [vmem:[%s313 + $0x10] sm:$0xff] %v945
        %962 = vst [vmem:[%s313 + $0x18] sm:$0xff] %v946
        %963 = vst [vmem:[%s313 + $0x20] sm:$0xff] %v947
        %964 = vst [vmem:[%s313 + $0x28] sm:$0xff] %v948
        %965 = vst [vmem:[%s313 + $0x30] sm:$0xff] %v949
        %966 = vst [vmem:[%s313 + $0x38] sm:$0xff] %v950
        %967 = vst [vmem:[%s313 + $0x40] sm:$0xff] %v951
        %968 = vst [vmem:[%s313 + $0x48] sm:$0xff] %v952
        %969 = vst [vmem:[%s313 + $0x50] sm:$0xff] %v953
        %970 = vst [vmem:[%s313 + $0x58] sm:$0xff] %v954
        %971 = vst [vmem:[%s313 + $0x60] sm:$0xff] %v955
        %972 = vst [vmem:[%s313 + $0x68] sm:$0xff] %v956
        %973 = vst [vmem:[%s313 + $0x70] sm:$0xff] %v957
        %974 = vst [vmem:[%s313 + $0x78] sm:$0xff] %v958
        %p975 = scmp.eq.s32.totalorder %s31, 2
        // Predicated region
        $region49: #{tpu_custom_call.1} parent=35 // pred_check
          %p976 = pneg %p975
        $region50: #{tpu_custom_call.1} parent=35 // pred_check_branch
          %978 = sbr.rel (%p976) target = $region52
        $region51: #{tpu_custom_call.1} parent=35 // pred_region
          %v979 = vld [vmem:[%s322] sm:$0xff]
          %v980 = vld [vmem:[%s322 + $0x8] sm:$0xff]
          %v981 = vld [vmem:[%s322 + $0x10] sm:$0xff]
          %v982 = vld [vmem:[%s322 + $0x18] sm:$0xff]
          %v983 = vld [vmem:[%s322 + $0x20] sm:$0xff]
          %v984 = vld [vmem:[%s322 + $0x28] sm:$0xff]
          %v985 = vld [vmem:[%s322 + $0x30] sm:$0xff]
          %v986 = vld [vmem:[%s322 + $0x38] sm:$0xff]
          %v987 = vld [vmem:[%s322 + $0x40] sm:$0xff]
          %v988 = vld [vmem:[%s322 + $0x48] sm:$0xff]
          %v989 = vld [vmem:[%s322 + $0x50] sm:$0xff]
          %v990 = vld [vmem:[%s322 + $0x58] sm:$0xff]
          %v991 = vld [vmem:[%s322 + $0x60] sm:$0xff]
          %v992 = vld [vmem:[%s322 + $0x68] sm:$0xff]
          %v993 = vld [vmem:[%s322 + $0x70] sm:$0xff]
          %v994 = vld [vmem:[%s322 + $0x78] sm:$0xff]
          %v995 = vld [vmem:[%s326] sm:$0x1]
          %997 = vset.pattern.permute.xlu0 0
          %998 = vperm.xlu0 %997, %v979
          %v999 = vpop.permute.xlu0 %998
          %1002 = vset.pattern.permute.xlu0 0
          %1003 = vperm.xlu0 %1002, %v980
          %v1004 = vpop.permute.xlu0 %1003
          %1007 = vset.pattern.permute.xlu0 0
          %1008 = vperm.xlu0 %1007, %v981
          %v1009 = vpop.permute.xlu0 %1008
          %1012 = vset.pattern.permute.xlu0 0
          %1013 = vperm.xlu0 %1012, %v982
          %v1014 = vpop.permute.xlu0 %1013
          %1017 = vset.pattern.permute.xlu0 0
          %1018 = vperm.xlu0 %1017, %v983
          %v1019 = vpop.permute.xlu0 %1018
          %1022 = vset.pattern.permute.xlu0 0
          %1023 = vperm.xlu0 %1022, %v984
          %v1024 = vpop.permute.xlu0 %1023
          %1027 = vset.pattern.permute.xlu0 0
          %1028 = vperm.xlu0 %1027, %v985
          %v1029 = vpop.permute.xlu0 %1028
          %1032 = vset.pattern.permute.xlu0 0
          %1033 = vperm.xlu0 %1032, %v986
          %v1034 = vpop.permute.xlu0 %1033
          %1037 = vset.pattern.permute.xlu0 0
          %1038 = vperm.xlu0 %1037, %v987
          %v1039 = vpop.permute.xlu0 %1038
          %1042 = vset.pattern.permute.xlu0 0
          %1043 = vperm.xlu0 %1042, %v988
          %v1044 = vpop.permute.xlu0 %1043
          %1047 = vset.pattern.permute.xlu0 0
          %1048 = vperm.xlu0 %1047, %v989
          %v1049 = vpop.permute.xlu0 %1048
          %1052 = vset.pattern.permute.xlu0 0
          %1053 = vperm.xlu0 %1052, %v990
          %v1054 = vpop.permute.xlu0 %1053
          %1057 = vset.pattern.permute.xlu0 0
          %1058 = vperm.xlu0 %1057, %v991
          %v1059 = vpop.permute.xlu0 %1058
          %1062 = vset.pattern.permute.xlu0 0
          %1063 = vperm.xlu0 %1062, %v992
          %v1064 = vpop.permute.xlu0 %1063
          %1067 = vset.pattern.permute.xlu0 0
          %1068 = vperm.xlu0 %1067, %v993
          %v1069 = vpop.permute.xlu0 %1068
          %1072 = vset.pattern.permute.xlu0 0
          %1073 = vperm.xlu0 %1072, %v994
          %v1074 = vpop.permute.xlu0 %1073
          %v1077 = vlaneseq
          %v1078 = vshrl.u32 %v1077, 7
          %v1079 = vsub.s32 0, %v1078
          %v1080 = vrot.slane %v995, %v1079
          %v1082 = vadd.f32 %v999, %v1080
          %v1083 = vadd.f32 %v1004, %v1080
          %v1084 = vadd.f32 %v1009, %v1080
          %v1085 = vadd.f32 %v1014, %v1080
          %v1086 = vadd.f32 %v1019, %v1080
          %v1087 = vadd.f32 %v1024, %v1080
          %v1088 = vadd.f32 %v1029, %v1080
          %v1089 = vadd.f32 %v1034, %v1080
          %v1090 = vadd.f32 %v1039, %v1080
          %v1091 = vadd.f32 %v1044, %v1080
          %v1092 = vadd.f32 %v1049, %v1080
          %v1093 = vadd.f32 %v1054, %v1080
          %v1094 = vadd.f32 %v1059, %v1080
          %v1095 = vadd.f32 %v1064, %v1080
          %v1096 = vadd.f32 %v1069, %v1080
          %v1097 = vadd.f32 %v1074, %v1080
          %v1098 = vld [vmem:[%s313] sm:$0xff]
          %v1099 = vld [vmem:[%s313 + $0x8] sm:$0xff]
          %v1100 = vld [vmem:[%s313 + $0x10] sm:$0xff]
          %v1101 = vld [vmem:[%s313 + $0x18] sm:$0xff]
          %v1102 = vld [vmem:[%s313 + $0x20] sm:$0xff]
          %v1103 = vld [vmem:[%s313 + $0x28] sm:$0xff]
          %v1104 = vld [vmem:[%s313 + $0x30] sm:$0xff]
          %v1105 = vld [vmem:[%s313 + $0x38] sm:$0xff]
          %v1106 = vld [vmem:[%s313 + $0x40] sm:$0xff]
          %v1107 = vld [vmem:[%s313 + $0x48] sm:$0xff]
          %v1108 = vld [vmem:[%s313 + $0x50] sm:$0xff]
          %v1109 = vld [vmem:[%s313 + $0x58] sm:$0xff]
          %v1110 = vld [vmem:[%s313 + $0x60] sm:$0xff]
          %v1111 = vld [vmem:[%s313 + $0x68] sm:$0xff]
          %v1112 = vld [vmem:[%s313 + $0x70] sm:$0xff]
          %v1113 = vld [vmem:[%s313 + $0x78] sm:$0xff]
          %v1114 = vmul.f32 %v1098, 2.0
          %v1115 = vmul.f32 %v1099, 2.0
          %v1116 = vmul.f32 %v1100, 2.0
          %v1117 = vmul.f32 %v1101, 2.0
          %v1118 = vmul.f32 %v1102, 2.0
          %v1119 = vmul.f32 %v1103, 2.0
          %v1120 = vmul.f32 %v1104, 2.0
          %v1121 = vmul.f32 %v1105, 2.0
          %v1122 = vmul.f32 %v1106, 2.0
          %v1123 = vmul.f32 %v1107, 2.0
          %v1124 = vmul.f32 %v1108, 2.0
          %v1125 = vmul.f32 %v1109, 2.0
          %v1126 = vmul.f32 %v1110, 2.0
          %v1127 = vmul.f32 %v1111, 2.0
          %v1128 = vmul.f32 %v1112, 2.0
          %v1129 = vmul.f32 %v1113, 2.0
          %v1130 = vsub.f32 %v1082, %v1114
          %v1131 = vsub.f32 %v1083, %v1115
          %v1132 = vsub.f32 %v1084, %v1116
          %v1133 = vsub.f32 %v1085, %v1117
          %v1134 = vsub.f32 %v1086, %v1118
          %v1135 = vsub.f32 %v1087, %v1119
          %v1136 = vsub.f32 %v1088, %v1120
          %v1137 = vsub.f32 %v1089, %v1121
          %v1138 = vsub.f32 %v1090, %v1122
          %v1139 = vsub.f32 %v1091, %v1123
          %v1140 = vsub.f32 %v1092, %v1124
          %v1141 = vsub.f32 %v1093, %v1125
          %v1142 = vsub.f32 %v1094, %v1126
          %v1143 = vsub.f32 %v1095, %v1127
          %v1144 = vsub.f32 %v1096, %v1128
          %v1145 = vsub.f32 %v1097, %v1129
          %v1146 = vmax.f32 %v1130, 0.0
          %v1147 = vmax.f32 %v1131, 0.0
          %v1148 = vmax.f32 %v1132, 0.0
          %v1149 = vmax.f32 %v1133, 0.0
          %v1150 = vmax.f32 %v1134, 0.0
          %v1151 = vmax.f32 %v1135, 0.0
          %v1152 = vmax.f32 %v1136, 0.0
          %v1153 = vmax.f32 %v1137, 0.0
          %v1154 = vmax.f32 %v1138, 0.0
          %v1155 = vmax.f32 %v1139, 0.0
          %v1156 = vmax.f32 %v1140, 0.0
          %v1157 = vmax.f32 %v1141, 0.0
          %v1158 = vmax.f32 %v1142, 0.0
          %v1159 = vmax.f32 %v1143, 0.0
          %v1160 = vmax.f32 %v1144, 0.0
          %v1161 = vmax.f32 %v1145, 0.0
          %1162 = vst [vmem:[%s313] sm:$0xff] %v1146
          %1163 = vst [vmem:[%s313 + $0x8] sm:$0xff] %v1147
          %1164 = vst [vmem:[%s313 + $0x10] sm:$0xff] %v1148
          %1165 = vst [vmem:[%s313 + $0x18] sm:$0xff] %v1149
          %1166 = vst [vmem:[%s313 + $0x20] sm:$0xff] %v1150
          %1167 = vst [vmem:[%s313 + $0x28] sm:$0xff] %v1151
          %1168 = vst [vmem:[%s313 + $0x30] sm:$0xff] %v1152
          %1169 = vst [vmem:[%s313 + $0x38] sm:$0xff] %v1153
          %1170 = vst [vmem:[%s313 + $0x40] sm:$0xff] %v1154
          %1171 = vst [vmem:[%s313 + $0x48] sm:$0xff] %v1155
          %1172 = vst [vmem:[%s313 + $0x50] sm:$0xff] %v1156
          %1173 = vst [vmem:[%s313 + $0x58] sm:$0xff] %v1157
          %1174 = vst [vmem:[%s313 + $0x60] sm:$0xff] %v1158
          %1175 = vst [vmem:[%s313 + $0x68] sm:$0xff] %v1159
          %1176 = vst [vmem:[%s313 + $0x70] sm:$0xff] %v1160
          %1177 = vst [vmem:[%s313 + $0x78] sm:$0xff] %v1161
        $region52: #{tpu_custom_call.1} parent=35 // pred_fallthru
          _
        %s1178 = sand.u32 %s161, 1
        %s1179 = scalar_lea.sflag [#allocation4], %s1178
        %s1180 = sand.u32 %s161, 1
        %s1181 = smul.addr %s1180, 128
        %s1182 = scalar_lea.vmem [#allocation7], %s1181
        // Predicated region
        $region53: #{tpu_custom_call.1} parent=35 // pred_check
          %p1183 = pneg %p171
        $region54: #{tpu_custom_call.1} parent=35 // pred_check_branch
          %1185 = sbr.rel (%p1183) target = $region56
        $region55: #{tpu_custom_call.1} parent=35 // pred_region
          %s1186 = smul.u32 16, %s29
          %s1188 = ssub.s32 2048, 2048
          %1189 = vsyncadd %s1179, %s1188
          %s1190 = smul.addr %s1186, 2
          %s1191 = sadd.s32 %s30, %s1190
          %s1192 = smul.addr %s1191, 128
          %s1193 = scalar_lea.hbm %s4, %s1192
          %s1194 = sshll.u32 %s1182, 4
          %s1195 = int_to_ptr.vmem [resolvable:$true] %s1194
          %1200 = dma.vmem_to_hbm [thread:$0]  %s1195, 2048, %s1193, %s1179, 128, 256, 8
        $region56: #{tpu_custom_call.1} parent=35 // pred_fallthru
          _
      $region36: #{tpu_custom_call.1} parent=5 // pred_fallthru
        _
      %p1201 = scmp.le.s32.totalorder 2, %s19
      // Predicated region
      $region57: #{tpu_custom_call.1} parent=5 // pred_check
        %p1202 = pneg %p1201
      $region58: #{tpu_custom_call.1} parent=5 // pred_check_branch
        %1204 = sbr.rel (%p1202) target = $region60
      $region59: #{tpu_custom_call.1} parent=5 // pred_region
        %s1205 = ssub.s32 %s19, 2
        // Predicated region
        $region61: #{tpu_custom_call.1} parent=59 // pred_check
          %p1206 = pneg %p177
        $region62: #{tpu_custom_call.1} parent=59 // pred_check_branch
          %1208 = sbr.rel (%p1206) target = $region64
        $region63: #{tpu_custom_call.1} parent=59 // pred_region
          %s1209 = sand.u32 %s162, 1
          %s1210 = scalar_lea.sflag [#allocation4], %s1209
          %s1211 = sand.u32 %s162, 1
          %s1212 = smul.addr %s1211, 128
          %s1213 = scalar_lea.vmem [#allocation7], %s1212
          %1214 = dma.done %s1210, 2048
        $region64: #{tpu_custom_call.1} parent=59 // pred_fallthru
          _
      $region60: #{tpu_custom_call.1} parent=5 // pred_fallthru
        _
    $region6: #{tpu_custom_call.1} parent=1 // loop_footer
      %s23 = sadd.s32 1, %s19
    $region7: #{tpu_custom_call.1} parent=1 // loop_footer_branch
      %18 = sbr.rel target = $region3
    $region8: #{tpu_custom_call.1} parent=1 // loop_exit
      _
    %1215 = vsyncpa [#allocation3], 1
    %s1216 = scalar_lea.sflag [#allocation3], 1
    %1217 = vsyncpa %s1216, 1
    %1218 = vsyncpa [#allocation6], 1
    %s1219 = scalar_lea.sflag [#allocation6], 1
    %1220 = vsyncpa %s1219, 1
    %1221 = vsyncpa [#allocation4], 1
    %s1222 = scalar_lea.sflag [#allocation4], 1
    %1223 = vsyncpa %s1222, 1

</llo_original>
